<compile_context>
chip_gen: v7x
topology: tpu7x:2x2x1
jax: 0.10.0
libtpu: 0.0.40
codegen_flags: <defaults>
</compile_context>

<pallas_src>
import functools
import numpy as np

import jax
import jax.numpy as jnp
from jax.experimental import pallas as pl
from jax.experimental.pallas import tpu as pltpu

# ----------------------------------------------------------------------------
# Fixed constants from the module __init__.
# ----------------------------------------------------------------------------
_KERNELS = np.array(
    [
        # k0
        [[0, 0, -2, 0, 0], [0, 0, 4, 0, 0], [-2, 4, 8, 4, -2], [0, 0, 4, 0, 0], [0, 0, -2, 0, 0]],
        # k1
        [[0, 0, 1, 0, 0], [0, -2, 0, -2, 0], [-2, 8, 10, 8, -2], [0, -2, 0, -2, 0], [0, 0, 1, 0, 0]],
        # k2
        [[0, 0, -2, 0, 0], [0, -2, 8, -2, 0], [1, 0, 10, 0, 1], [0, -2, 8, -2, 0], [0, 0, -2, 0, 0]],
        # k3
        [[0, 0, -3, 0, 0], [0, 4, 0, 4, 0], [-3, 0, 12, 0, -3], [0, 4, 0, 4, 0], [0, 0, -3, 0, 0]],
    ],
    dtype=np.float32,
)


def _index_from_layout(layout: str) -> np.ndarray:
    """Returns a (3,2,2) int index tensor (plane 4 == identity/input)."""
    rggb = np.array([[4, 1], [2, 3], [0, 4], [4, 0], [3, 2], [1, 4]]).reshape(3, 2, 2)
    if layout == "RGGB":
        return rggb
    if layout == "GRBG":
        return np.roll(rggb, 1, axis=-1)
    if layout == "GBRG":
        return np.roll(rggb, 1, axis=-2)
    if layout == "BGGR":
        return np.roll(np.roll(rggb, 1, axis=-1), 1, axis=-2)
    raise ValueError(layout)


def _pick_tile_h(H: int, W: int, B: int, budget_bytes: int) -> int:
    """Largest multiple-of-8 divisor of H whose working set fits the budget."""
    # ~22 live (TH, W) f32 slabs: double-buffered in/out blocks + kernel temps.
    per_row = 4 * W * 22
    cap = max(8, budget_bytes // max(per_row, 1))
    # Keep enough grid steps around to feed two TensorCores (v7x) on small B.
    if B * (H // 8) >= 8:
        cap = min(cap, max(8, (B * H) // 8))
    cap = min(cap, 512)
    best = 8                      # H % 8 == 0 is guaranteed on this path
    th = 16
    while th <= min(cap, H):
        if H % th == 0:
            best = th
        th += 8
    return best


# ----------------------------------------------------------------------------
# Pallas kernel: one (TH, W) row-tile of the output per grid step.
# ----------------------------------------------------------------------------
def _debayer_kernel(xm_ref, xt_ref, xb_ref, out_ref, *, index, TH, W):
    f32 = jnp.float32
    t = pl.program_id(1)
    nt = pl.num_programs(1)

    xm = xm_ref[0].astype(f32)          # (TH, W)  rows [r0, r0+TH)
    xt = xt_ref[0].astype(f32)          # (8, W)   rows [max(r0-8, 0), ..+8)
    xb = xb_ref[0].astype(f32)          # (8, W)   rows [min(r0+TH, H-8), ..+8)

    # --- 2-row reflect halo above / below this tile (arithmetic blend on a
    #     scalar 0/1 weight -> exact select, no mask broadcast needed) -------
    # first tile: padded rows r0-2, r0-1 reflect to data rows 2, 1 (in xt).
    w_top = (t == 0).astype(f32)
    top = w_top * jnp.concatenate([xt[2:3], xt[1:2]], axis=0) \
        + (1.0 - w_top) * xt[6:8]
    # last tile: padded rows H, H+1 reflect to data rows H-2, H-3 (in xb).
    w_bot = (t == nt - 1).astype(f32)
    bot = w_bot * jnp.concatenate([xb[6:7], xb[5:6]], axis=0) \
        + (1.0 - w_bot) * xb[0:2]

    xv = jnp.concatenate([top, xm, bot], axis=0)   # (TH+4, W): rows r0-2 .. r0+TH+1

    # --- horizontal (lane) shifts with 2-column reflect at the frame edges --
    def colshift(y, dj):
        s = dj - 2
        if s == 0:
            return y
        if s == -1:    # needs col c-1 ; c=0 -> 1
            return jnp.concatenate([y[:, 1:2], y[:, 0:W - 1]], axis=1)
        if s == -2:    # needs col c-2 ; c=0 -> 2, c=1 -> 1
            return jnp.concatenate([y[:, 2:3], y[:, 1:2], y[:, 0:W - 2]], axis=1)
        if s == 1:     # needs col c+1 ; c=W-1 -> W-2
            return jnp.concatenate([y[:, 1:W], y[:, W - 2:W - 1]], axis=1)
        # s == 2       # needs col c+2 ; c=W-2 -> W-2, c=W-1 -> W-3
        return jnp.concatenate([y[:, 2:W], y[:, W - 2:W - 1], y[:, W - 3:W - 2]], axis=1)

    # Shared symmetric sub-sums of the Malvar-He-Cutler stencil.
    C = xv[2:2 + TH]                                   # centre tap
    V1 = xv[1:1 + TH] + xv[3:3 + TH]                   # vertical   +-1
    V2 = xv[0:0 + TH] + xv[4:4 + TH]                   # vertical   +-2
    xmid = xv[1:TH + 3]                                # only rows feeding dj=1,3
    xl = colshift(xmid, 1)                             # cols c-1
    xr = colshift(xmid, 3)                             # cols c+1
    H1 = xl[1:1 + TH] + xr[1:1 + TH]                   # horizontal +-1
    D1 = (xl[0:TH] + xl[2:2 + TH]) + (xr[0:TH] + xr[2:2 + TH])   # four diagonals
    H2 = colshift(C, 0) + colshift(C, 4)               # horizontal +-2 (single use)
    VH2 = V2 + H2

    # Malvar-He-Cutler planes (kernel weights pre-divided by 16).
    c10 = 0.625 * C
    p0 = 0.5 * C + 0.25 * (V1 + H1) - 0.125 * VH2
    p1 = c10 + 0.5 * H1 + 0.0625 * V2 - 0.125 * (H2 + D1)
    p2 = c10 + 0.5 * V1 + 0.0625 * H2 - 0.125 * (V2 + D1)
    p3 = 0.75 * C + 0.25 * D1 - 0.1875 * VH2
    planes = (p0, p1, p2, p3, C)                       # plane 4 == identity

    # 2x2 Bayer gather via broadcasted parity masks (tiles start on even rows,
    # TH is a multiple of 8, so local parity == global parity).
    r_odd = (jax.lax.broadcasted_iota(jnp.int32, (TH, 1), 0) & 1) == 1
    c_odd = (jax.lax.broadcasted_iota(jnp.int32, (1, W), 1) & 1) == 1

    for c in range(3):
        i00 = planes[int(index[c, 0, 0])]
        i01 = planes[int(index[c, 0, 1])]
        i10 = planes[int(index[c, 1, 0])]
        i11 = planes[int(index[c, 1, 1])]
        even_r = i00 if i00 is i01 else jnp.where(c_odd, i01, i00)
        odd_r = i10 if i10 is i11 else jnp.where(c_odd, i11, i10)
        chan = even_r if even_r is odd_r else jnp.where(r_odd, odd_r, even_r)
        out_ref[0, c, :, :] = jnp.clip(chan, 0.0, 1.0).astype(out_ref.dtype)


def debayer5x5(x: jax.Array, layout: str = "RGGB", tile_h: int | None = None) -> jax.Array:
    """x: (B,1,H,W) in [0,1]  ->  (B,3,H,W) RGB in x.dtype, clamped to [0,1]."""
    B, C, H, W = x.shape
    assert C == 1 and H % 2 == 0 and W % 2 == 0
    if H % 8 != 0 or H < 8 or W < 4:
        # TODO(synk): tiny / non-multiple-of-8-height frames take the XLA reference path.
        return debayer5x5_ref(x, layout)

    index = _index_from_layout(layout)

    # Generation-aware VMEM budgeting (128 MiB on v5e/v6e, 64 MiB on v7x).
    try:
        vmem_cap = int(pltpu.get_tpu_info().vmem_capacity_bytes)
    except Exception:
        vmem_cap = 64 * 1024 * 1024          # conservative (v7x-safe) default
    budget = min(vmem_cap // 2, 72 * 1024 * 1024)
    vmem_limit = int(min(vmem_cap * 3 // 4, 112 * 1024 * 1024))

    if tile_h is None:
        TH = _pick_tile_h(H, W, B, budget)
    else:
        TH = int(tile_h)
    assert TH % 8 == 0 and H % TH == 0, "tile_h must be a multiple of 8 dividing H"
    T = H // TH
    th8 = TH // 8
    last_blk8 = H // 8 - 1

    x3 = x.reshape(B, H, W)                  # drop the singleton channel (no copy)
    kernel = functools.partial(_debayer_kernel, index=index, TH=TH, W=W)

    out = pl.pallas_call(
        kernel,
        out_shape=jax.ShapeDtypeStruct((B, 3, H, W), x.dtype),
        grid=(B, T),
        in_specs=[
            # main TH-row slab of the raw frame
            pl.BlockSpec((1, TH, W), lambda b, t: (b, t, 0)),
            # 8-row slab just above (clamped to the top block for the first tile)
            pl.BlockSpec((1, 8, W), lambda b, t: (b, jnp.maximum(t * th8 - 1, 0), 0)),
            # 8-row slab just below (clamped to the bottom block for the last tile)
            pl.BlockSpec((1, 8, W),
                         lambda b, t: (b, jnp.minimum((t + 1) * th8, last_blk8), 0)),
        ],
        out_specs=pl.BlockSpec((1, 3, TH, W), lambda b, t: (b, 0, t, 0)),
        compiler_params=pltpu.CompilerParams(
            dimension_semantics=("parallel", "parallel"),
            vmem_limit_bytes=vmem_limit,
        ),
    )(x3, x3, x3)
    return out


# ----------------------------------------------------------------------------
# Pure-JAX reference (mirrors the PyTorch forward) for a correctness check.
# ----------------------------------------------------------------------------
def debayer5x5_ref(x: jax.Array, layout: str = "RGGB") -> jax.Array:
    B, C, H, W = x.shape
    xf = x.astype(jnp.float32)
    xpad = jnp.pad(xf, ((0, 0), (0, 0), (2, 2), (2, 2)), mode="reflect")
    k = jnp.asarray(_KERNELS).reshape(4, 1, 5, 5) / 16.0
    planes = jax.lax.conv_general_dilated(
        xpad, k, window_strides=(1, 1), padding="VALID",
        dimension_numbers=("NCHW", "OIHW", "NCHW"),
        precision=jax.lax.Precision.HIGHEST)
    planes = jnp.concatenate([planes, xf], axis=1)            # (B,5,H,W)
    idx = jnp.asarray(_index_from_layout(layout))             # (3,2,2)
    idx_full = jnp.tile(idx, (1, H // 2, W // 2))              # (3,H,W)
    idx_full = jnp.broadcast_to(idx_full[None], (B, 3, H, W))
    rgb = jnp.take_along_axis(planes, idx_full, axis=1)
    return jnp.clip(rgb, 0.0, 1.0).astype(x.dtype)


if __name__ == "__main__":
    key = jax.random.PRNGKey(0)
    B, C, H, W = 2, 1, 16, 16
    x = jax.random.uniform(key, (B, C, H, W), dtype=jnp.float32)

    out = jax.block_until_ready(debayer5x5(x))
    assert out.shape == (B, 3, H, W) and out.dtype == x.dtype
    ref = debayer5x5_ref(x)
    np.testing.assert_allclose(np.asarray(out), np.asarray(ref), atol=2e-5, rtol=1e-5)

    # Multi-row-tile path (top / interior / bottom halo handling) + non-128 width.
    x2 = jax.random.uniform(jax.random.PRNGKey(1), (1, 1, 32, 24), dtype=jnp.float32)
    out2 = jax.block_until_ready(debayer5x5(x2, tile_h=8))
    ref2 = debayer5x5_ref(x2)
    np.testing.assert_allclose(np.asarray(out2), np.asarray(ref2), atol=2e-5, rtol=1e-5)

    # A different Bayer layout + two-tile halo path.
    out3 = jax.block_until_ready(debayer5x5(x2, layout="GRBG", tile_h=16))
    ref3 = debayer5x5_ref(x2, layout="GRBG")
    np.testing.assert_allclose(np.asarray(out3), np.asarray(ref3), atol=2e-5, rtol=1e-5)

    print("KERNEL_OK")
</pallas_src>

<mosaic_0001>
module attributes {stable_mosaic.version = 11 : i64} {
  func.func @_debayer_kernel(%arg0: i32, %arg1: i32, %arg2: memref<1x16x16xf32, #tpu.memory_space<vmem>>, %arg3: memref<1x8x16xf32, #tpu.memory_space<vmem>>, %arg4: memref<1x8x16xf32, #tpu.memory_space<vmem>>, %arg5: memref<1x3x16x16xf32, #tpu.memory_space<vmem>>) attributes {dimension_semantics = [#tpu.dimension_semantics<parallel>, #tpu.dimension_semantics<parallel>], iteration_bounds = array<i64: 2, 1>, scalar_prefetch = 0 : i64, scratch_operands = 0 : i64, tpu.core_type = #tpu.core_type<tc>, window_params = [{transform_indices = @transform_0, window_bounds = array<i64: 1, 16, 16>}, {transform_indices = @transform_1, window_bounds = array<i64: 1, 8, 16>}, {transform_indices = @transform_2, window_bounds = array<i64: 1, 8, 16>}, {transform_indices = @transform_3, window_bounds = array<i64: 1, 3, 16, 16>}]} {
    %c0 = arith.constant 0 : index
    %c0_0 = arith.constant 0 : index
    %c0_1 = arith.constant 0 : index
    %0 = vector.load %arg2[%c0, %c0_0, %c0_1] : memref<1x16x16xf32, #tpu.memory_space<vmem>>, vector<1x16x16xf32>
    %1 = vector.shape_cast %0 : vector<1x16x16xf32> to vector<16x16xf32>
    %c0_2 = arith.constant 0 : index
    %c0_3 = arith.constant 0 : index
    %c0_4 = arith.constant 0 : index
    %2 = vector.load %arg3[%c0_2, %c0_3, %c0_4] : memref<1x8x16xf32, #tpu.memory_space<vmem>>, vector<1x8x16xf32>
    %3 = vector.shape_cast %2 : vector<1x8x16xf32> to vector<8x16xf32>
    %c0_5 = arith.constant 0 : index
    %c0_6 = arith.constant 0 : index
    %c0_7 = arith.constant 0 : index
    %4 = vector.load %arg4[%c0_5, %c0_6, %c0_7] : memref<1x8x16xf32, #tpu.memory_space<vmem>>, vector<1x8x16xf32>
    %5 = vector.shape_cast %4 : vector<1x8x16xf32> to vector<8x16xf32>
    %c0_i32 = arith.constant 0 : i32
    %6 = arith.cmpi eq, %arg1, %c0_i32 : i32
    %7 = arith.extui %6 : i1 to i32
    %8 = arith.sitofp %7 : i32 to f32
    %9 = vector.extract_strided_slice %3 {offsets = [2, 0], sizes = [1, 16], strides = [1, 1]} : vector<8x16xf32> to vector<1x16xf32>
    %10 = vector.extract_strided_slice %3 {offsets = [1, 0], sizes = [1, 16], strides = [1, 1]} : vector<8x16xf32> to vector<1x16xf32>
    %11 = tpu.concatenate %9, %10 in 0 : vector<1x16xf32>, vector<1x16xf32> -> vector<2x16xf32>
    %12 = vector.broadcast %8 : f32 to vector<2x16xf32>
    %13 = arith.mulf %12, %11 : vector<2x16xf32>
    %cst = arith.constant 1.000000e+00 : f32
    %14 = arith.subf %cst, %8 : f32
    %15 = vector.extract_strided_slice %3 {offsets = [6, 0], sizes = [2, 16], strides = [1, 1]} : vector<8x16xf32> to vector<2x16xf32>
    %16 = vector.broadcast %14 : f32 to vector<2x16xf32>
    %17 = arith.mulf %16, %15 : vector<2x16xf32>
    %18 = arith.addf %13, %17 : vector<2x16xf32>
    %c0_i32_8 = arith.constant 0 : i32
    %19 = arith.cmpi eq, %arg1, %c0_i32_8 : i32
    %20 = arith.extui %19 : i1 to i32
    %21 = arith.sitofp %20 : i32 to f32
    %22 = vector.extract_strided_slice %5 {offsets = [6, 0], sizes = [1, 16], strides = [1, 1]} : vector<8x16xf32> to vector<1x16xf32>
    %23 = vector.extract_strided_slice %5 {offsets = [5, 0], sizes = [1, 16], strides = [1, 1]} : vector<8x16xf32> to vector<1x16xf32>
    %24 = tpu.concatenate %22, %23 in 0 : vector<1x16xf32>, vector<1x16xf32> -> vector<2x16xf32>
    %25 = vector.broadcast %21 : f32 to vector<2x16xf32>
    %26 = arith.mulf %25, %24 : vector<2x16xf32>
    %cst_9 = arith.constant 1.000000e+00 : f32
    %27 = arith.subf %cst_9, %21 : f32
    %28 = vector.extract_strided_slice %5 {offsets = [0, 0], sizes = [2, 16], strides = [1, 1]} : vector<8x16xf32> to vector<2x16xf32>
    %29 = vector.broadcast %27 : f32 to vector<2x16xf32>
    %30 = arith.mulf %29, %28 : vector<2x16xf32>
    %31 = arith.addf %26, %30 : vector<2x16xf32>
    %32 = tpu.concatenate %18, %1, %31 in 0 : vector<2x16xf32>, vector<16x16xf32>, vector<2x16xf32> -> vector<20x16xf32>
    %33 = vector.extract_strided_slice %32 {offsets = [2, 0], sizes = [16, 16], strides = [1, 1]} : vector<20x16xf32> to vector<16x16xf32>
    %34 = vector.extract_strided_slice %32 {offsets = [1, 0], sizes = [16, 16], strides = [1, 1]} : vector<20x16xf32> to vector<16x16xf32>
    %35 = vector.extract_strided_slice %32 {offsets = [3, 0], sizes = [16, 16], strides = [1, 1]} : vector<20x16xf32> to vector<16x16xf32>
    %36 = arith.addf %34, %35 : vector<16x16xf32>
    %37 = vector.extract_strided_slice %32 {offsets = [0, 0], sizes = [16, 16], strides = [1, 1]} : vector<20x16xf32> to vector<16x16xf32>
    %38 = vector.extract_strided_slice %32 {offsets = [4, 0], sizes = [16, 16], strides = [1, 1]} : vector<20x16xf32> to vector<16x16xf32>
    %39 = arith.addf %37, %38 : vector<16x16xf32>
    %40 = vector.extract_strided_slice %32 {offsets = [1, 0], sizes = [18, 16], strides = [1, 1]} : vector<20x16xf32> to vector<18x16xf32>
    %41 = vector.extract_strided_slice %40 {offsets = [0, 1], sizes = [18, 1], strides = [1, 1]} : vector<18x16xf32> to vector<18x1xf32>
    %42 = vector.extract_strided_slice %40 {offsets = [0, 0], sizes = [18, 15], strides = [1, 1]} : vector<18x16xf32> to vector<18x15xf32>
    %43 = tpu.concatenate %41, %42 in 1 : vector<18x1xf32>, vector<18x15xf32> -> vector<18x16xf32>
    %44 = vector.extract_strided_slice %40 {offsets = [0, 1], sizes = [18, 15], strides = [1, 1]} : vector<18x16xf32> to vector<18x15xf32>
    %45 = vector.extract_strided_slice %40 {offsets = [0, 14], sizes = [18, 1], strides = [1, 1]} : vector<18x16xf32> to vector<18x1xf32>
    %46 = tpu.concatenate %44, %45 in 1 : vector<18x15xf32>, vector<18x1xf32> -> vector<18x16xf32>
    %47 = vector.extract_strided_slice %43 {offsets = [1, 0], sizes = [16, 16], strides = [1, 1]} : vector<18x16xf32> to vector<16x16xf32>
    %48 = vector.extract_strided_slice %46 {offsets = [1, 0], sizes = [16, 16], strides = [1, 1]} : vector<18x16xf32> to vector<16x16xf32>
    %49 = arith.addf %47, %48 : vector<16x16xf32>
    %50 = vector.extract_strided_slice %43 {offsets = [0, 0], sizes = [16, 16], strides = [1, 1]} : vector<18x16xf32> to vector<16x16xf32>
    %51 = vector.extract_strided_slice %43 {offsets = [2, 0], sizes = [16, 16], strides = [1, 1]} : vector<18x16xf32> to vector<16x16xf32>
    %52 = arith.addf %50, %51 : vector<16x16xf32>
    %53 = vector.extract_strided_slice %46 {offsets = [0, 0], sizes = [16, 16], strides = [1, 1]} : vector<18x16xf32> to vector<16x16xf32>
    %54 = vector.extract_strided_slice %46 {offsets = [2, 0], sizes = [16, 16], strides = [1, 1]} : vector<18x16xf32> to vector<16x16xf32>
    %55 = arith.addf %53, %54 : vector<16x16xf32>
    %56 = arith.addf %52, %55 : vector<16x16xf32>
    %57 = vector.extract_strided_slice %33 {offsets = [0, 2], sizes = [16, 1], strides = [1, 1]} : vector<16x16xf32> to vector<16x1xf32>
    %58 = vector.extract_strided_slice %33 {offsets = [0, 1], sizes = [16, 1], strides = [1, 1]} : vector<16x16xf32> to vector<16x1xf32>
    %59 = vector.extract_strided_slice %33 {offsets = [0, 0], sizes = [16, 14], strides = [1, 1]} : vector<16x16xf32> to vector<16x14xf32>
    %60 = tpu.concatenate %57, %58, %59 in 1 : vector<16x1xf32>, vector<16x1xf32>, vector<16x14xf32> -> vector<16x16xf32>
    %61 = vector.extract_strided_slice %33 {offsets = [0, 2], sizes = [16, 14], strides = [1, 1]} : vector<16x16xf32> to vector<16x14xf32>
    %62 = vector.extract_strided_slice %33 {offsets = [0, 14], sizes = [16, 1], strides = [1, 1]} : vector<16x16xf32> to vector<16x1xf32>
    %63 = vector.extract_strided_slice %33 {offsets = [0, 13], sizes = [16, 1], strides = [1, 1]} : vector<16x16xf32> to vector<16x1xf32>
    %64 = tpu.concatenate %61, %62, %63 in 1 : vector<16x14xf32>, vector<16x1xf32>, vector<16x1xf32> -> vector<16x16xf32>
    %65 = arith.addf %60, %64 : vector<16x16xf32>
    %66 = arith.addf %39, %65 : vector<16x16xf32>
    %cst_10 = arith.constant 6.250000e-01 : f32
    %67 = vector.broadcast %cst_10 : f32 to vector<16x16xf32>
    %68 = arith.mulf %67, %33 : vector<16x16xf32>
    %cst_11 = arith.constant 5.000000e-01 : f32
    %69 = vector.broadcast %cst_11 : f32 to vector<16x16xf32>
    %70 = arith.mulf %69, %33 : vector<16x16xf32>
    %71 = arith.addf %36, %49 : vector<16x16xf32>
    %cst_12 = arith.constant 2.500000e-01 : f32
    %72 = vector.broadcast %cst_12 : f32 to vector<16x16xf32>
    %73 = arith.mulf %72, %71 : vector<16x16xf32>
    %74 = arith.addf %70, %73 : vector<16x16xf32>
    %cst_13 = arith.constant 1.250000e-01 : f32
    %75 = vector.broadcast %cst_13 : f32 to vector<16x16xf32>
    %76 = arith.mulf %75, %66 : vector<16x16xf32>
    %77 = arith.subf %74, %76 : vector<16x16xf32>
    %cst_14 = arith.constant 5.000000e-01 : f32
    %78 = vector.broadcast %cst_14 : f32 to vector<16x16xf32>
    %79 = arith.mulf %78, %49 : vector<16x16xf32>
    %80 = arith.addf %68, %79 : vector<16x16xf32>
    %cst_15 = arith.constant 6.250000e-02 : f32
    %81 = vector.broadcast %cst_15 : f32 to vector<16x16xf32>
    %82 = arith.mulf %81, %39 : vector<16x16xf32>
    %83 = arith.addf %80, %82 : vector<16x16xf32>
    %84 = arith.addf %65, %56 : vector<16x16xf32>
    %cst_16 = arith.constant 1.250000e-01 : f32
    %85 = vector.broadcast %cst_16 : f32 to vector<16x16xf32>
    %86 = arith.mulf %85, %84 : vector<16x16xf32>
    %87 = arith.subf %83, %86 : vector<16x16xf32>
    %cst_17 = arith.constant 5.000000e-01 : f32
    %88 = vector.broadcast %cst_17 : f32 to vector<16x16xf32>
    %89 = arith.mulf %88, %36 : vector<16x16xf32>
    %90 = arith.addf %68, %89 : vector<16x16xf32>
    %cst_18 = arith.constant 6.250000e-02 : f32
    %91 = vector.broadcast %cst_18 : f32 to vector<16x16xf32>
    %92 = arith.mulf %91, %65 : vector<16x16xf32>
    %93 = arith.addf %90, %92 : vector<16x16xf32>
    %94 = arith.addf %39, %56 : vector<16x16xf32>
    %cst_19 = arith.constant 1.250000e-01 : f32
    %95 = vector.broadcast %cst_19 : f32 to vector<16x16xf32>
    %96 = arith.mulf %95, %94 : vector<16x16xf32>
    %97 = arith.subf %93, %96 : vector<16x16xf32>
    %cst_20 = arith.constant 7.500000e-01 : f32
    %98 = vector.broadcast %cst_20 : f32 to vector<16x16xf32>
    %99 = arith.mulf %98, %33 : vector<16x16xf32>
    %cst_21 = arith.constant 2.500000e-01 : f32
    %100 = vector.broadcast %cst_21 : f32 to vector<16x16xf32>
    %101 = arith.mulf %100, %56 : vector<16x16xf32>
    %102 = arith.addf %99, %101 : vector<16x16xf32>
    %cst_22 = arith.constant 1.875000e-01 : f32
    %103 = vector.broadcast %cst_22 : f32 to vector<16x16xf32>
    %104 = arith.mulf %103, %66 : vector<16x16xf32>
    %105 = arith.subf %102, %104 : vector<16x16xf32>
    %106 = tpu.iota {dimensions = array<i32: 0>} : vector<16x1xi32>
    %c1_i32 = arith.constant 1 : i32
    %107 = vector.broadcast %c1_i32 : i32 to vector<16x1xi32>
    %108 = arith.andi %106, %107 : vector<16x1xi32>
    %c1_i32_23 = arith.constant 1 : i32
    %109 = vector.broadcast %c1_i32_23 : i32 to vector<16x1xi32>
    %110 = arith.cmpi eq, %108, %109 : vector<16x1xi32>
    %111 = tpu.iota {dimensions = array<i32: 1>} : vector<1x16xi32>
    %c1_i32_24 = arith.constant 1 : i32
    %112 = vector.broadcast %c1_i32_24 : i32 to vector<1x16xi32>
    %113 = arith.andi %111, %112 : vector<1x16xi32>
    %c1_i32_25 = arith.constant 1 : i32
    %114 = vector.broadcast %c1_i32_25 : i32 to vector<1x16xi32>
    %115 = arith.cmpi eq, %113, %114 : vector<1x16xi32>
    %116 = vector.shape_cast %115 : vector<1x16xi1> to vector<1x16xi1>
    %117 = vector.broadcast %116 : vector<1x16xi1> to vector<16x16xi1>
    %118 = arith.select %117, %87, %33 : vector<16x16xi1>, vector<16x16xf32>
    %119 = vector.shape_cast %115 : vector<1x16xi1> to vector<1x16xi1>
    %120 = vector.broadcast %119 : vector<1x16xi1> to vector<16x16xi1>
    %121 = arith.select %120, %105, %97 : vector<16x16xi1>, vector<16x16xf32>
    %122 = vector.shape_cast %110 : vector<16x1xi1> to vector<16x1xi1>
    %123 = vector.broadcast %122 : vector<16x1xi1> to vector<16x16xi1>
    %124 = arith.select %123, %121, %118 : vector<16x16xi1>, vector<16x16xf32>
    %cst_26 = arith.constant 0.000000e+00 : f32
    %cst_27 = arith.constant 1.000000e+00 : f32
    %125 = vector.broadcast %cst_26 : f32 to vector<16x16xf32>
    %126 = arith.maximumf %125, %124 : vector<16x16xf32>
    %127 = vector.broadcast %cst_27 : f32 to vector<16x16xf32>
    %128 = arith.minimumf %127, %126 : vector<16x16xf32>
    %c0_28 = arith.constant 0 : index
    %c0_29 = arith.constant 0 : index
    %c0_30 = arith.constant 0 : index
    %c0_31 = arith.constant 0 : index
    %129 = vector.load %arg5[%c0_28, %c0_29, %c0_30, %c0_31] : memref<1x3x16x16xf32, #tpu.memory_space<vmem>>, vector<1x1x16x16xf32>
    %130 = vector.shape_cast %129 : vector<1x1x16x16xf32> to vector<16x16xf32>
    %131 = vector.shape_cast %128 : vector<16x16xf32> to vector<1x1x16x16xf32>
    tpu.vector_store %arg5[%c0_28, %c0_29, %c0_30, %c0_31], %131 {strides = array<i32>} : memref<1x3x16x16xf32, #tpu.memory_space<vmem>>, vector<1x1x16x16xf32>,
    %132 = vector.shape_cast %115 : vector<1x16xi1> to vector<1x16xi1>
    %133 = vector.broadcast %132 : vector<1x16xi1> to vector<16x16xi1>
    %134 = arith.select %133, %33, %77 : vector<16x16xi1>, vector<16x16xf32>
    %135 = vector.shape_cast %115 : vector<1x16xi1> to vector<1x16xi1>
    %136 = vector.broadcast %135 : vector<1x16xi1> to vector<16x16xi1>
    %137 = arith.select %136, %77, %33 : vector<16x16xi1>, vector<16x16xf32>
    %138 = vector.shape_cast %110 : vector<16x1xi1> to vector<16x1xi1>
    %139 = vector.broadcast %138 : vector<16x1xi1> to vector<16x16xi1>
    %140 = arith.select %139, %137, %134 : vector<16x16xi1>, vector<16x16xf32>
    %cst_32 = arith.constant 0.000000e+00 : f32
    %cst_33 = arith.constant 1.000000e+00 : f32
    %141 = vector.broadcast %cst_32 : f32 to vector<16x16xf32>
    %142 = arith.maximumf %141, %140 : vector<16x16xf32>
    %143 = vector.broadcast %cst_33 : f32 to vector<16x16xf32>
    %144 = arith.minimumf %143, %142 : vector<16x16xf32>
    %c0_34 = arith.constant 0 : index
    %c1 = arith.constant 1 : index
    %c0_35 = arith.constant 0 : index
    %c0_36 = arith.constant 0 : index
    %145 = vector.load %arg5[%c0_34, %c1, %c0_35, %c0_36] : memref<1x3x16x16xf32, #tpu.memory_space<vmem>>, vector<1x1x16x16xf32>
    %146 = vector.shape_cast %145 : vector<1x1x16x16xf32> to vector<16x16xf32>
    %147 = vector.shape_cast %144 : vector<16x16xf32> to vector<1x1x16x16xf32>
    tpu.vector_store %arg5[%c0_34, %c1, %c0_35, %c0_36], %147 {strides = array<i32>} : memref<1x3x16x16xf32, #tpu.memory_space<vmem>>, vector<1x1x16x16xf32>,
    %148 = vector.shape_cast %115 : vector<1x16xi1> to vector<1x16xi1>
    %149 = vector.broadcast %148 : vector<1x16xi1> to vector<16x16xi1>
    %150 = arith.select %149, %97, %105 : vector<16x16xi1>, vector<16x16xf32>
    %151 = vector.shape_cast %115 : vector<1x16xi1> to vector<1x16xi1>
    %152 = vector.broadcast %151 : vector<1x16xi1> to vector<16x16xi1>
    %153 = arith.select %152, %33, %87 : vector<16x16xi1>, vector<16x16xf32>
    %154 = vector.shape_cast %110 : vector<16x1xi1> to vector<16x1xi1>
    %155 = vector.broadcast %154 : vector<16x1xi1> to vector<16x16xi1>
    %156 = arith.select %155, %153, %150 : vector<16x16xi1>, vector<16x16xf32>
    %cst_37 = arith.constant 0.000000e+00 : f32
    %cst_38 = arith.constant 1.000000e+00 : f32
    %157 = vector.broadcast %cst_37 : f32 to vector<16x16xf32>
    %158 = arith.maximumf %157, %156 : vector<16x16xf32>
    %159 = vector.broadcast %cst_38 : f32 to vector<16x16xf32>
    %160 = arith.minimumf %159, %158 : vector<16x16xf32>
    %c0_39 = arith.constant 0 : index
    %c2 = arith.constant 2 : index
    %c0_40 = arith.constant 0 : index
    %c0_41 = arith.constant 0 : index
    %161 = vector.load %arg5[%c0_39, %c2, %c0_40, %c0_41] : memref<1x3x16x16xf32, #tpu.memory_space<vmem>>, vector<1x1x16x16xf32>
    %162 = vector.shape_cast %161 : vector<1x1x16x16xf32> to vector<16x16xf32>
    %163 = vector.shape_cast %160 : vector<16x16xf32> to vector<1x1x16x16xf32>
    tpu.vector_store %arg5[%c0_39, %c2, %c0_40, %c0_41], %163 {strides = array<i32>} : memref<1x3x16x16xf32, #tpu.memory_space<vmem>>, vector<1x1x16x16xf32>,
    return
  }
  func.func @transform_0(%arg0: i32, %arg1: i32) -> (i32, i32, i32) {
    %c0_i32 = arith.constant 0 : i32
    %c0_i32_0 = arith.constant 0 : i32
    return %arg0, %arg1, %c0_i32 : i32, i32, i32
  }
  func.func @transform_1(%arg0: i32, %arg1: i32) -> (i32, i32, i32) {
    %c2_i32 = arith.constant 2 : i32
    %0 = arith.muli %arg1, %c2_i32 : i32
    %c1_i32 = arith.constant 1 : i32
    %1 = arith.subi %0, %c1_i32 : i32
    %c0_i32 = arith.constant 0 : i32
    %2 = arith.maxsi %1, %c0_i32 : i32
    %c0_i32_0 = arith.constant 0 : i32
    %c0_i32_1 = arith.constant 0 : i32
    return %arg0, %2, %c0_i32_0 : i32, i32, i32
  }
  func.func @transform_2(%arg0: i32, %arg1: i32) -> (i32, i32, i32) {
    %c1_i32 = arith.constant 1 : i32
    %0 = arith.addi %arg1, %c1_i32 : i32
    %c2_i32 = arith.constant 2 : i32
    %1 = arith.muli %0, %c2_i32 : i32
    %c1_i32_0 = arith.constant 1 : i32
    %2 = arith.minsi %1, %c1_i32_0 : i32
    %c0_i32 = arith.constant 0 : i32
    %c0_i32_1 = arith.constant 0 : i32
    return %arg0, %2, %c0_i32 : i32, i32, i32
  }
  func.func @transform_3(%arg0: i32, %arg1: i32) -> (i32, i32, i32, i32) {
    %c0_i32 = arith.constant 0 : i32
    %c0_i32_0 = arith.constant 0 : i32
    %c0_i32_1 = arith.constant 0 : i32
    return %arg0, %c0_i32, %arg1, %c0_i32_0 : i32, i32, i32, i32
  }
}

</mosaic_0001>

<llo_original>
// kernel: tpu_custom_call.1
$region0: #{tpu_custom_call.1}
  #allocation0 [shape = 'u32[]', space=smem, size = 0x4, offset = 0x4, fixed_abs, tag = 'smem constant byte address 0x4 - core index']
  #allocation1 [shape = 'u32[144,128]{1,0:T(1,128)}', space=vmem, size = 0x12000, scoped, tag = 'internal scratch']
  %s0 = inlined_call_operand.hbm [shape: f32[2,16,16], index: 0, kind: input, shape index: {}]
  %s1 = inlined_call_operand.hbm [shape: f32[2,16,16], index: 1, kind: input, shape index: {}]
  %s2 = inlined_call_operand.hbm [shape: f32[2,16,16], index: 2, kind: input, shape index: {}]
  %s3 = inlined_call_operand.hbm [shape: f32[2,3,16,16], index: 3, kind: output, shape index: {}]
  %s4 = sld [smem:[#allocation0]]
  $region57: #{tpu_custom_call.1} parent=0
    _
  %s6 = ssub.s32 1, %s4
  %s7 = scalar_select 0, %s6, %s4
  $region1: #{tpu_custom_call.1} parent=0
    #allocation2 [shape = 'u8[16384]{0}', space=vmem, size = 0x4000, scoped, tag = 'input window, operand 0']
    #allocation3 [shape = 's32[2]{0}', space=sflag, size = 0x8, scoped, tag = 'scoped memory for tpu_custom_call.1']
    #allocation4 [shape = 's32[2]{0}', space=sflag, size = 0x8, scoped, tag = 'scoped memory for tpu_custom_call.1']
    #allocation5 [shape = 'u8[8192]{0}', space=vmem, size = 0x2000, scoped, tag = 'input window, operand 1']
    #allocation6 [shape = 's32[2]{0}', space=sflag, size = 0x8, scoped, tag = 'scoped memory for tpu_custom_call.1']
    #allocation7 [shape = 'u8[8192]{0}', space=vmem, size = 0x2000, scoped, tag = 'input window, operand 2']
    #allocation8 [shape = 'u8[49152]{0}', space=vmem, size = 0xc000, scoped, tag = 'output window, operand 0']
    %8 = vsyncpa [#allocation3], 0
    %s9 = scalar_lea.sflag [#allocation3], 1
    %10 = vsyncpa %s9, 0
    %11 = vsyncpa [#allocation6], 0
    %s12 = scalar_lea.sflag [#allocation6], 1
    %13 = vsyncpa %s12, 0
    %14 = vsyncpa [#allocation4], 0
    %s15 = scalar_lea.sflag [#allocation4], 1
    %16 = vsyncpa %s15, 0
    loop: start=0, step=1, limit=4
    $region2: #{tpu_custom_call.1} parent=1 // loop_pre_header
      _
    $region3: #{tpu_custom_call.1} parent=1 // loop_header
      %s18 = sphi 0, %s22
      %p19 = scmp.ge.s32.totalorder %s18, 4
      %s25 = sphi 0, %s37
      %s26 = sphi 0, %s33
      %s27 = sphi 0, %s25
      %s28 = sphi 0, %s26
      %s29 = sphi 0, %s27
      %s30 = sphi 0, %s28
      %s42 = sphi 0, %s44
      %s45 = sphi 0, %s42
      %s46 = sphi 0, %s45
      %s62 = sphi 0, %s46
      %s78 = sphi 0, %s80
      %s81 = sphi 0, %s78
      %s82 = sphi 0, %s81
      %s98 = sphi 0, %s82
      %s114 = sphi 0, %s116
      %s117 = sphi 0, %s114
      %s118 = sphi 0, %s117
      %s134 = sphi 0, %s118
      %s142 = sphi 0, %s144
      %s145 = sphi 0, %s142
      %s146 = sphi 0, %s145
      %s162 = sphi 0, %s146
    $region4: #{tpu_custom_call.1} parent=1 // loop_header_branch
      %21 = sbr.rel (%p19) target = $region8
    $region5: #{tpu_custom_call.1} parent=1 // loop_body
      %s23 = ssub.s32 %s18, 1
      %s24 = ssub.s32 %s18, 2
      %s31 = sadd.s32 1, %s26
      %p32 = scmp.ge.s32.totalorder %s31, 1
      %s33 = scalar_select %p32, 0, %s31
      %s34 = sadd.s32 1, %s25
      %s35 = scalar_select %p32, %s34, %s25
      %p36 = scmp.ge.s32.totalorder %s35, 2
      %s37 = scalar_select %p36, 0, %s35
      %s38 = ssub.s32 %s25, %s37
      %s39 = ssub.s32 %s26, %s33
      %s40 = sor.u32 %s38, %s39
      %p41 = scmp.eq.s32.totalorder %s40, 0
      %s43 = sadd.s32 %s42, 1
      %s44 = scalar_select %p41, %s42, %s43
      %p47 = pneg %p41
      %p48 = scmp.eq.s32.totalorder %s18, 1
      %p49 = por %p47, %p48
      %p50 = scmp.ne.s32.totalorder %s42, %s45
      %p51 = scmp.eq.s32.totalorder %s18, 0
      %p52 = por %p50, %p51
      %p53 = scmp.ne.s32.totalorder %s42, %s45
      %p54 = scmp.eq.s32.totalorder %s23, 1
      %p55 = por %p53, %p54
      %p56 = scmp.ne.s32.totalorder %s45, %s46
      %p57 = scmp.eq.s32.totalorder %s23, 0
      %p58 = por %p56, %p57
      %p59 = scmp.ne.s32.totalorder %s45, %s46
      %p60 = scmp.eq.s32.totalorder %s24, 1
      %p61 = por %p59, %p60
      %p63 = scmp.ne.s32.totalorder %s46, %s62
      %p64 = scmp.eq.s32.totalorder %s24, 0
      %p65 = por %p63, %p64
      %s66 = smul.u32 %s26, 2
      %s67 = ssub.s32 %s66, 1
      %p68 = scmp.gt.s32.totalorder %s67, 0
      %s69 = scalar_select %p68, %s67, 0
      %s70 = smul.u32 %s33, 2
      %s71 = ssub.s32 %s70, 1
      %p72 = scmp.gt.s32.totalorder %s71, 0
      %s73 = scalar_select %p72, %s71, 0
      %s74 = ssub.s32 %s25, %s37
      %s75 = ssub.s32 %s69, %s73
      %s76 = sor.u32 %s74, %s75
      %p77 = scmp.eq.s32.totalorder %s76, 0
      %s79 = sadd.s32 %s78, 1
      %s80 = scalar_select %p77, %s78, %s79
      %p83 = pneg %p77
      %p84 = scmp.eq.s32.totalorder %s18, 1
      %p85 = por %p83, %p84
      %p86 = scmp.ne.s32.totalorder %s78, %s81
      %p87 = scmp.eq.s32.totalorder %s18, 0
      %p88 = por %p86, %p87
      %p89 = scmp.ne.s32.totalorder %s78, %s81
      %p90 = scmp.eq.s32.totalorder %s23, 1
      %p91 = por %p89, %p90
      %p92 = scmp.ne.s32.totalorder %s81, %s82
      %p93 = scmp.eq.s32.totalorder %s23, 0
      %p94 = por %p92, %p93
      %p95 = scmp.ne.s32.totalorder %s81, %s82
      %p96 = scmp.eq.s32.totalorder %s24, 1
      %p97 = por %p95, %p96
      %p99 = scmp.ne.s32.totalorder %s82, %s98
      %p100 = scmp.eq.s32.totalorder %s24, 0
      %p101 = por %p99, %p100
      %s102 = sadd.s32 %s26, 1
      %s103 = smul.u32 %s102, 2
      %p104 = scmp.lt.s32.totalorder %s103, 1
      %s105 = scalar_select %p104, %s103, 1
      %s106 = sadd.s32 %s33, 1
      %s107 = smul.u32 %s106, 2
      %p108 = scmp.lt.s32.totalorder %s107, 1
      %s109 = scalar_select %p108, %s107, 1
      %s110 = ssub.s32 %s25, %s37
      %s111 = ssub.s32 %s105, %s109
      %s112 = sor.u32 %s110, %s111
      %p113 = scmp.eq.s32.totalorder %s112, 0
      %s115 = sadd.s32 %s114, 1
      %s116 = scalar_select %p113, %s114, %s115
      %p119 = pneg %p113
      %p120 = scmp.eq.s32.totalorder %s18, 1
      %p121 = por %p119, %p120
      %p122 = scmp.ne.s32.totalorder %s114, %s117
      %p123 = scmp.eq.s32.totalorder %s18, 0
      %p124 = por %p122, %p123
      %p125 = scmp.ne.s32.totalorder %s114, %s117
      %p126 = scmp.eq.s32.totalorder %s23, 1
      %p127 = por %p125, %p126
      %p128 = scmp.ne.s32.totalorder %s117, %s118
      %p129 = scmp.eq.s32.totalorder %s23, 0
      %p130 = por %p128, %p129
      %p131 = scmp.ne.s32.totalorder %s117, %s118
      %p132 = scmp.eq.s32.totalorder %s24, 1
      %p133 = por %p131, %p132
      %p135 = scmp.ne.s32.totalorder %s118, %s134
      %p136 = scmp.eq.s32.totalorder %s24, 0
      %p137 = por %p135, %p136
      %s138 = ssub.s32 %s25, %s37
      %s139 = ssub.s32 %s26, %s33
      %s140 = sor.u32 %s138, %s139
      %p141 = scmp.eq.s32.totalorder %s140, 0
      %s143 = sadd.s32 %s142, 1
      %s144 = scalar_select %p141, %s142, %s143
      %p147 = pneg %p141
      %p148 = scmp.eq.s32.totalorder %s18, 1
      %p149 = por %p147, %p148
      %p150 = scmp.ne.s32.totalorder %s142, %s145
      %p151 = scmp.eq.s32.totalorder %s18, 0
      %p152 = por %p150, %p151
      %p153 = scmp.ne.s32.totalorder %s142, %s145
      %p154 = scmp.eq.s32.totalorder %s23, 1
      %p155 = por %p153, %p154
      %p156 = scmp.ne.s32.totalorder %s145, %s146
      %p157 = scmp.eq.s32.totalorder %s23, 0
      %p158 = por %p156, %p157
      %p159 = scmp.ne.s32.totalorder %s145, %s146
      %p160 = scmp.eq.s32.totalorder %s24, 1
      %p161 = por %p159, %p160
      %p163 = scmp.ne.s32.totalorder %s146, %s162
      %p164 = scmp.eq.s32.totalorder %s24, 0
      %p165 = por %p163, %p164
      %p166 = scmp.le.s32.totalorder 1, %s18
      %p167 = scmp.lt.s32.totalorder %s18, 3
      %p168 = pnand %p166, %p167
      %p169 = pneg %p168
      // Predicated region
      $region9: #{tpu_custom_call.1} parent=5 // pred_check
        _
      $region10: #{tpu_custom_call.1} parent=5 // pred_check_branch
        %171 = sbr.rel (%p168) target = $region12
      $region11: #{tpu_custom_call.1} parent=5 // pred_region
        %s172 = ssub.s32 %s18, 1
      $region12: #{tpu_custom_call.1} parent=5 // pred_fallthru
        _
      %p173 = scmp.lt.s32.totalorder %s18, 2
      // Predicated region
      $region13: #{tpu_custom_call.1} parent=5 // pred_check
        %p174 = pneg %p173
      $region14: #{tpu_custom_call.1} parent=5 // pred_check_branch
        %176 = sbr.rel (%p174) target = $region16
      $region15: #{tpu_custom_call.1} parent=5 // pred_region
        // Predicated region
        $region17: #{tpu_custom_call.1} parent=15 // pred_check
          %p177 = pneg %p52
        $region18: #{tpu_custom_call.1} parent=15 // pred_check_branch
          %179 = sbr.rel (%p177) target = $region20
        $region19: #{tpu_custom_call.1} parent=15 // pred_region
          %s180 = sand.u32 %s42, 1
          %s181 = scalar_lea.sflag [#allocation3], %s180
          %s182 = sand.u32 %s42, 1
          %s183 = smul.addr %s182, 16
          %s184 = scalar_lea.vmem [#allocation2], %s183
          %s185 = smul.u32 2, %s26
          %s187 = ssub.s32 256, 256
          %188 = vsyncadd %s181, %s187
          %s189 = smul.addr %s25, 2
          %s190 = sadd.s32 %s185, %s189
          %s191 = smul.addr %s190, 128
          %s192 = scalar_lea.hbm %s0, %s191
          %s193 = sshll.u32 %s184, 4
          %s194 = int_to_ptr.vmem [resolvable:$true] %s193
          %199 = dma.hbm_to_vmem [thread:$0]  %s192, 256, %s194, %s181, 128, 128, 8
        $region20: #{tpu_custom_call.1} parent=15 // pred_fallthru
          _
        // Predicated region
        $region21: #{tpu_custom_call.1} parent=15 // pred_check
          %p200 = pneg %p88
        $region22: #{tpu_custom_call.1} parent=15 // pred_check_branch
          %202 = sbr.rel (%p200) target = $region24
        $region23: #{tpu_custom_call.1} parent=15 // pred_region
          %s203 = sand.u32 %s18, 1
          %s204 = scalar_lea.sflag [#allocation6], %s203
          %s205 = sand.u32 %s78, 1
          %s206 = smul.addr %s205, 8
          %s207 = scalar_lea.vmem [#allocation5], %s206
          %s208 = smul.u32 %s26, 2
          %s209 = ssub.s32 %s208, 1
          %p210 = scmp.gt.s32.totalorder %s209, 0
          %s211 = scalar_select %p210, %s209, 0
          %s213 = ssub.s32 128, 128
          %214 = vsyncadd %s204, %s213
          %s215 = smul.addr %s25, 2
          %s216 = sadd.s32 %s211, %s215
          %s217 = smul.addr %s216, 128
          %s218 = scalar_lea.hbm %s1, %s217
          %s220 = sshll.u32 %s207, 4
          %s221 = int_to_ptr.vmem [resolvable:$true] %s220
          %223 = dma.hbm_to_vmem [thread:$0]  %s218, 128, %s221, %s204
        $region24: #{tpu_custom_call.1} parent=15 // pred_fallthru
          _
        // Predicated region
        $region25: #{tpu_custom_call.1} parent=15 // pred_check
          %p224 = pneg %p124
        $region26: #{tpu_custom_call.1} parent=15 // pred_check_branch
          %226 = sbr.rel (%p224) target = $region28
        $region27: #{tpu_custom_call.1} parent=15 // pred_region
          %s227 = sand.u32 %s18, 1
          %s228 = scalar_lea.sflag [#allocation6], %s227
          %s229 = sand.u32 %s114, 1
          %s230 = smul.addr %s229, 8
          %s231 = scalar_lea.vmem [#allocation7], %s230
          %s232 = sadd.s32 %s26, 1
          %s233 = smul.u32 %s232, 2
          %p234 = scmp.lt.s32.totalorder %s233, 1
          %s235 = scalar_select %p234, %s233, 1
          %s237 = ssub.s32 128, 128
          %238 = vsyncadd %s228, %s237
          %s239 = smul.addr %s25, 2
          %s240 = sadd.s32 %s235, %s239
          %s241 = smul.addr %s240, 128
          %s242 = scalar_lea.hbm %s2, %s241
          %s244 = sshll.u32 %s231, 4
          %s245 = int_to_ptr.vmem [resolvable:$true] %s244
          %247 = dma.hbm_to_vmem [thread:$0]  %s242, 128, %s245, %s228
        $region28: #{tpu_custom_call.1} parent=15 // pred_fallthru
          _
      $region16: #{tpu_custom_call.1} parent=5 // pred_fallthru
        _
      %p248 = scmp.le.s32.totalorder 1, %s18
      %p249 = scmp.lt.s32.totalorder %s18, 3
      %p250 = pnand %p248, %p249
      %p251 = pneg %p250
      // Predicated region
      $region29: #{tpu_custom_call.1} parent=5 // pred_check
        _
      $region30: #{tpu_custom_call.1} parent=5 // pred_check_branch
        %253 = sbr.rel (%p250) target = $region32
      $region31: #{tpu_custom_call.1} parent=5 // pred_region
        %s254 = ssub.s32 %s18, 1
        %s255 = sand.u32 %s45, 1
        %s256 = scalar_lea.sflag [#allocation3], %s255
        %s257 = sand.u32 %s45, 1
        %s258 = smul.addr %s257, 16
        %s259 = scalar_lea.vmem [#allocation2], %s258
        // Predicated region
        $region33: #{tpu_custom_call.1} parent=31 // pred_check
          %p260 = pneg %p58
        $region34: #{tpu_custom_call.1} parent=31 // pred_check_branch
          %262 = sbr.rel (%p260) target = $region36
        $region35: #{tpu_custom_call.1} parent=31 // pred_region
          %263 = dma.done %s256, 256
        $region36: #{tpu_custom_call.1} parent=31 // pred_fallthru
          _
        %s264 = sand.u32 %s23, 1
        %s265 = scalar_lea.sflag [#allocation6], %s264
        %s266 = sand.u32 %s81, 1
        %s267 = smul.addr %s266, 8
        %s268 = scalar_lea.vmem [#allocation5], %s267
        // Predicated region
        $region37: #{tpu_custom_call.1} parent=31 // pred_check
          %p269 = pneg %p94
        $region38: #{tpu_custom_call.1} parent=31 // pred_check_branch
          %271 = sbr.rel (%p269) target = $region40
        $region39: #{tpu_custom_call.1} parent=31 // pred_region
          %272 = dma.done %s265, 128
        $region40: #{tpu_custom_call.1} parent=31 // pred_fallthru
          _
        %s273 = sand.u32 %s23, 1
        %s274 = scalar_lea.sflag [#allocation6], %s273
        %s275 = sand.u32 %s117, 1
        %s276 = smul.addr %s275, 8
        %s277 = scalar_lea.vmem [#allocation7], %s276
        // Predicated region
        $region41: #{tpu_custom_call.1} parent=31 // pred_check
          %p278 = pneg %p130
        $region42: #{tpu_custom_call.1} parent=31 // pred_check_branch
          %280 = sbr.rel (%p278) target = $region44
        $region43: #{tpu_custom_call.1} parent=31 // pred_region
          %281 = dma.done %s274, 128
        $region44: #{tpu_custom_call.1} parent=31 // pred_fallthru
          _
        %s282 = sand.u32 %s45, 1
        %s283 = scalar_lea.sflag [#allocation3], %s282
        %s284 = sand.u32 %s45, 1
        %s285 = smul.addr %s284, 16
        %s286 = scalar_lea.vmem [#allocation2], %s285
        %p287 = pneg %p58
        %p288 = pneg %p55
        %s289 = sand.u32 %s23, 1
        %s290 = scalar_lea.sflag [#allocation6], %s289
        %s291 = sand.u32 %s81, 1
        %s292 = smul.addr %s291, 8
        %s293 = scalar_lea.vmem [#allocation5], %s292
        %p294 = pneg %p94
        %p295 = pneg %p91
        %s296 = sand.u32 %s23, 1
        %s297 = scalar_lea.sflag [#allocation6], %s296
        %s298 = sand.u32 %s117, 1
        %s299 = smul.addr %s298, 8
        %s300 = scalar_lea.vmem [#allocation7], %s299
        %p301 = pneg %p130
        %p302 = pneg %p127
        %p303 = pneg %p158
        %p304 = pneg %p155
        %s305 = sand.u32 %s145, 1
        %s306 = scalar_lea.sflag [#allocation4], %s305
        %s307 = sand.u32 %s145, 1
        %s308 = smul.addr %s307, 48
        %s309 = scalar_lea.vmem [#allocation8], %s308
        %s310 = smul.u32 2, %s28
        %s311 = smul.u32 %s28, 2
        %s312 = ssub.s32 %s311, 1
        %p313 = scmp.gt.s32.totalorder %s312, 0
        %s314 = scalar_select %p313, %s312, 0
        %s315 = sadd.s32 %s28, 1
        %s316 = smul.u32 %s315, 2
        %p317 = scmp.lt.s32.totalorder %s316, 1
        %s318 = scalar_select %p317, %s316, 1
        %s319 = smul.u32 2, %s28
        %v320 = vld [vmem:[%s259] sm:$0xff]
        %v321 = vld [vmem:[%s259 + $0x8] sm:$0xff]
        %v322 = vld [vmem:[%s268] sm:$0xff]
        %v323 = vld [vmem:[%s277] sm:$0xff]
        %p324 = scmp.eq.s32.totalorder %s28, 0
        %s325 = scalar_select %p324, 1, 0
        %s326 = scvt.s32.f32 %s325
        %v328 = vrot.slane %v322, 2
        %vm330 = vcmask 1040384
        %v331 = vsel %vm330, %v328, %v322
        %v332 = vstv %s326
        %v333 = vmul.f32 %v332, %v331
        %s334 = ssub.f32 1.0, %s326
        %v335 = vstv %s334
        %v336 = vmul.f32 %v335, %v322
        %v338 = vrot.slane %v336, 6
        %v340 = vadd.f32 %v333, %v338
        %v342 = vrot.slane %v323, 6
        %v344 = vrot.slane %v323, 4
        %v346 = vsel %vm330, %v342, %v344
        %v347 = vmul.f32 %v332, %v346
        %v348 = vmul.f32 %v335, %v323
        %v349 = vadd.f32 %v347, %v348
        %vm352 = vcmask 1041408
        %v353 = vrot.slane %v320, 6
        %v354 = vrot.slane %v321, 6
        %v355 = vsel %vm352, %v353, %v354
        %v360 = vrot.slane %v349, 6
        %v362 = vsel %vm352, %v340, %v353
        %v363 = vsel %vm352, %v354, %v360
        %vm366 = vcmask 1045504
        %v367 = vrot.slane %v362, 2
        %v368 = vrot.slane %v355, 2
        %v369 = vsel %vm366, %v367, %v368
        %v370 = vrot.slane %v363, 2
        %v371 = vsel %vm366, %v368, %v370
        %v375 = vadd.f32 %v362, %v369
        %v376 = vadd.f32 %v355, %v371
        %v377 = vadd.f32 %v363, %v370
        %vm378 = vcmask 1043456
        %v379 = vrot.slane %v362, 4
        %v380 = vrot.slane %v355, 4
        %v381 = vsel %vm378, %v379, %v380
        %v382 = vrot.slane %v363, 4
        %v383 = vsel %vm378, %v380, %v382
        %v386 = vadd.f32 %v362, %v381
        %v387 = vadd.f32 %v355, %v383
        %388 = vrot.lane.b32.xlu0 %v362, 127
        %v389 = vpop.permute.xlu0 %388
        %390 = vrot.lane.b32.xlu0 %v355, 127
        %v391 = vpop.permute.xlu0 %390
        %392 = vrot.lane.b32.xlu0 %v363, 127
        %v393 = vpop.permute.xlu0 %392
        %397 = vrot.lane.b32.xlu0 %v362, 1
        %v398 = vpop.permute.xlu0 %397
        %399 = vrot.lane.b32.xlu0 %v355, 1
        %v400 = vpop.permute.xlu0 %399
        %401 = vrot.lane.b32.xlu0 %v363, 1
        %v402 = vpop.permute.xlu0 %401
        %vm406 = vcmask 7168
        %v407 = vsel %vm406, %v389, %v398
        %v408 = vsel %vm406, %v391, %v400
        %v409 = vsel %vm406, %v393, %v402
        %vm410 = vcmask 121856
        %v411 = vsel %vm410, %v389, %v398
        %v412 = vsel %vm410, %v391, %v400
        %v413 = vsel %vm410, %v393, %v402
        %v414 = vadd.f32 %v407, %v411
        %v415 = vadd.f32 %v408, %v412
        %v416 = vadd.f32 %v409, %v413
        %v420 = vrot.slane %v407, 2
        %v421 = vrot.slane %v408, 2
        %v422 = vsel %vm366, %v420, %v421
        %v423 = vrot.slane %v409, 2
        %v424 = vsel %vm366, %v421, %v423
        %v428 = vadd.f32 %v407, %v422
        %v429 = vadd.f32 %v408, %v424
        %v430 = vadd.f32 %v409, %v423
        %v434 = vrot.slane %v411, 2
        %v435 = vrot.slane %v412, 2
        %v436 = vsel %vm366, %v434, %v435
        %v437 = vrot.slane %v413, 2
        %v438 = vsel %vm366, %v435, %v437
        %v442 = vadd.f32 %v411, %v436
        %v443 = vadd.f32 %v412, %v438
        %v444 = vadd.f32 %v413, %v437
        %v445 = vadd.f32 %v428, %v442
        %v446 = vadd.f32 %v429, %v443
        %v447 = vadd.f32 %v430, %v444
        %448 = vrot.lane.b32.xlu0 %v362, 126
        %v449 = vpop.permute.xlu0 %448
        %450 = vrot.lane.b32.xlu0 %v355, 126
        %v451 = vpop.permute.xlu0 %450
        %452 = vrot.lane.b32.xlu0 %v363, 126
        %v453 = vpop.permute.xlu0 %452
        %457 = vrot.lane.b32.xlu0 %v362, 2
        %v458 = vpop.permute.xlu0 %457
        %459 = vrot.lane.b32.xlu0 %v355, 2
        %v460 = vpop.permute.xlu0 %459
        %461 = vrot.lane.b32.xlu0 %v363, 2
        %v462 = vpop.permute.xlu0 %461
        %v466 = vsel %vm406, %v449, %v362
        %v467 = vsel %vm406, %v451, %v355
        %v468 = vsel %vm406, %v453, %v363
        %vm469 = vcmask 15360
        %v470 = vsel %vm469, %v466, %v458
        %v471 = vsel %vm469, %v467, %v460
        %v472 = vsel %vm469, %v468, %v462
        %vm473 = vcmask 113664
        %v474 = vsel %vm473, %v449, %v362
        %v475 = vsel %vm473, %v451, %v355
        %v476 = vsel %vm473, %v453, %v363
        %v477 = vsel %vm410, %v474, %v458
        %v478 = vsel %vm410, %v475, %v460
        %v479 = vsel %vm410, %v476, %v462
        %v480 = vadd.f32 %v470, %v477
        %v481 = vadd.f32 %v471, %v478
        %v482 = vadd.f32 %v472, %v479
        %v486 = vrot.slane %v480, 2
        %v487 = vrot.slane %v481, 2
        %v488 = vsel %vm366, %v486, %v487
        %v489 = vrot.slane %v482, 2
        %v490 = vsel %vm366, %v487, %v489
        %v493 = vadd.f32 %v386, %v488
        %v494 = vadd.f32 %v387, %v490
        %v495 = vmul.f32 %v362, 0.625
        %v496 = vmul.f32 %v355, 0.625
        %v497 = vmul.f32 %v363, 0.625
        %v498 = vmul.f32 %v362, 0.5
        %v499 = vmul.f32 %v355, 0.5
        %v500 = vmul.f32 %v363, 0.5
        %vm504 = vcmask 1046528
        %v505 = vrot.slane %v414, 1
        %v506 = vrot.slane %v415, 1
        %v507 = vsel %vm504, %v505, %v506
        %v508 = vrot.slane %v416, 1
        %v509 = vsel %vm504, %v506, %v508
        %v513 = vadd.f32 %v375, %v507
        %v514 = vadd.f32 %v376, %v509
        %v515 = vadd.f32 %v377, %v508
        %v516 = vmul.f32 %v513, 0.25
        %v517 = vmul.f32 %v514, 0.25
        %v518 = vmul.f32 %v515, 0.25
        %v522 = vrot.slane %v516, 7
        %v523 = vrot.slane %v517, 7
        %v524 = vsel %vm330, %v522, %v523
        %v525 = vrot.slane %v518, 7
        %v526 = vsel %vm330, %v523, %v525
        %v530 = vadd.f32 %v498, %v522
        %v531 = vadd.f32 %v499, %v524
        %v532 = vadd.f32 %v500, %v526
        %v533 = vmul.f32 %v493, 0.125
        %v534 = vmul.f32 %v494, 0.125
        %v537 = vrot.slane %v533, 6
        %v538 = vrot.slane %v534, 6
        %v539 = vsel %vm352, %v537, %v538
        %v543 = vsub.f32 %v530, %v537
        %v544 = vsub.f32 %v531, %v539
        %v545 = vsub.f32 %v532, %v538
        %v546 = vmul.f32 %v414, 0.5
        %v547 = vmul.f32 %v415, 0.5
        %v548 = vmul.f32 %v416, 0.5
        %v549 = vadd.f32 %v495, %v546
        %v550 = vadd.f32 %v496, %v547
        %v551 = vadd.f32 %v497, %v548
        %v552 = vmul.f32 %v386, 0.0625
        %v553 = vmul.f32 %v387, 0.0625
        %v556 = vrot.slane %v552, 6
        %v557 = vrot.slane %v553, 6
        %v558 = vsel %vm352, %v556, %v557
        %v562 = vadd.f32 %v549, %v556
        %v563 = vadd.f32 %v550, %v558
        %v564 = vadd.f32 %v551, %v557
        %v568 = vrot.slane %v445, 7
        %v569 = vrot.slane %v446, 7
        %v570 = vsel %vm330, %v568, %v569
        %v571 = vrot.slane %v447, 7
        %v572 = vsel %vm330, %v569, %v571
        %v576 = vadd.f32 %v480, %v568
        %v577 = vadd.f32 %v481, %v570
        %v578 = vadd.f32 %v482, %v572
        %v579 = vmul.f32 %v576, 0.125
        %v580 = vmul.f32 %v577, 0.125
        %v581 = vmul.f32 %v578, 0.125
        %v582 = vsub.f32 %v562, %v579
        %v583 = vsub.f32 %v563, %v580
        %v584 = vsub.f32 %v564, %v581
        %v585 = vmul.f32 %v375, 0.5
        %v586 = vmul.f32 %v376, 0.5
        %v587 = vmul.f32 %v377, 0.5
        %v591 = vrot.slane %v585, 7
        %v592 = vrot.slane %v586, 7
        %v593 = vsel %vm330, %v591, %v592
        %v594 = vrot.slane %v587, 7
        %v595 = vsel %vm330, %v592, %v594
        %v599 = vadd.f32 %v495, %v591
        %v600 = vadd.f32 %v496, %v593
        %v601 = vadd.f32 %v497, %v595
        %v602 = vmul.f32 %v480, 0.0625
        %v603 = vmul.f32 %v481, 0.0625
        %v604 = vmul.f32 %v482, 0.0625
        %v605 = vadd.f32 %v599, %v602
        %v606 = vadd.f32 %v600, %v603
        %v607 = vadd.f32 %v601, %v604
        %v608 = vrot.slane %v445, 1
        %v609 = vrot.slane %v446, 1
        %v610 = vsel %vm504, %v608, %v609
        %v611 = vrot.slane %v447, 1
        %v612 = vsel %vm504, %v609, %v611
        %v615 = vadd.f32 %v386, %v610
        %v616 = vadd.f32 %v387, %v612
        %v617 = vmul.f32 %v615, 0.125
        %v618 = vmul.f32 %v616, 0.125
        %v621 = vrot.slane %v617, 6
        %v622 = vrot.slane %v618, 6
        %v623 = vsel %vm352, %v621, %v622
        %v627 = vsub.f32 %v605, %v621
        %v628 = vsub.f32 %v606, %v623
        %v629 = vsub.f32 %v607, %v622
        %v630 = vmul.f32 %v362, 0.75
        %v631 = vmul.f32 %v355, 0.75
        %v632 = vmul.f32 %v363, 0.75
        %v633 = vmul.f32 %v445, 0.25
        %v634 = vmul.f32 %v446, 0.25
        %v635 = vmul.f32 %v447, 0.25
        %v639 = vrot.slane %v633, 7
        %v640 = vrot.slane %v634, 7
        %v641 = vsel %vm330, %v639, %v640
        %v642 = vrot.slane %v635, 7
        %v643 = vsel %vm330, %v640, %v642
        %v647 = vadd.f32 %v630, %v639
        %v648 = vadd.f32 %v631, %v641
        %v649 = vadd.f32 %v632, %v643
        %v650 = vmul.f32 %v493, 0.1875
        %v651 = vmul.f32 %v494, 0.1875
        %v654 = vrot.slane %v650, 6
        %v655 = vrot.slane %v651, 6
        %v656 = vsel %vm352, %v654, %v655
        %v660 = vsub.f32 %v647, %v654
        %v661 = vsub.f32 %v648, %v656
        %v662 = vsub.f32 %v649, %v655
        %v663 = vlaneseq
        %v664 = vshrl.u32 %v663, 7
        %v665 = vadd.s32 %v664, 8
        %v666 = vand.u32 %v664, 1
        %v667 = vand.u32 %v665, 1
        %vm668 = vcmp.eq.s32.totalorder %v666, 1
        %vm669 = vcmp.eq.s32.totalorder %v667, 1
        %v670 = vlaneseq
        %v671 = vand.u32 %v670, 127
        %v672 = vand.u32 %v671, 1
        %vm673 = vcmp.eq.s32.totalorder %v672, 1
        %v674 = vsel %vm673, 1, 0
        %vm675 = vcmp.eq.s32.totalorder %v674, 1
        %v676 = vsel %vm675, %v582, %v362
        %v677 = vsel %vm675, %v583, %v355
        %v678 = vsel %vm675, %v584, %v363
        %v679 = vsel %vm675, %v660, %v627
        %v680 = vsel %vm675, %v661, %v628
        %v681 = vsel %vm675, %v662, %v629
        %v682 = vsel %vm668, 1, 0
        %v683 = vsel %vm669, 1, 0
        %vm684 = vcmp.eq.s32.totalorder %v682, 1
        %vm685 = vcmp.eq.s32.totalorder %v683, 1
        %v689 = vrot.slane %v679, 2
        %v690 = vrot.slane %v680, 2
        %v691 = vsel %vm366, %v689, %v690
        %v692 = vrot.slane %v681, 2
        %v693 = vsel %vm366, %v690, %v692
        %v699 = vrot.slane %v676, 2
        %v700 = vrot.slane %v677, 2
        %v701 = vsel %vm366, %v699, %v700
        %v702 = vrot.slane %v678, 2
        %v703 = vsel %vm366, %v700, %v702
        %v706 = vsel %vm684, %v691, %v701
        %v707 = vsel %vm685, %v693, %v703
        %v708 = vmax.f32 %v706, 0.0
        %v709 = vmax.f32 %v707, 0.0
        %v710 = vmin.f32 %v708, 1.0
        %v711 = vmin.f32 %v709, 1.0
        %vm712 = vcmask 130048
        %713 = vst.msk [vmem:[%s309] sm:$0xff] %vm712, %v710
        %714 = vst.msk [vmem:[%s309 + $0x8] sm:$0xff] %vm712, %v711
        %v715 = vsel %vm675, %v362, %v543
        %v716 = vsel %vm675, %v355, %v544
        %v717 = vsel %vm675, %v363, %v545
        %v718 = vsel %vm675, %v543, %v362
        %v719 = vsel %vm675, %v544, %v355
        %v720 = vsel %vm675, %v545, %v363
        %v724 = vrot.slane %v718, 2
        %v725 = vrot.slane %v719, 2
        %v726 = vsel %vm366, %v724, %v725
        %v727 = vrot.slane %v720, 2
        %v728 = vsel %vm366, %v725, %v727
        %v734 = vrot.slane %v715, 2
        %v735 = vrot.slane %v716, 2
        %v736 = vsel %vm366, %v734, %v735
        %v737 = vrot.slane %v717, 2
        %v738 = vsel %vm366, %v735, %v737
        %v741 = vsel %vm684, %v726, %v736
        %v742 = vsel %vm685, %v728, %v738
        %v743 = vmax.f32 %v741, 0.0
        %v744 = vmax.f32 %v742, 0.0
        %v745 = vmin.f32 %v743, 1.0
        %v746 = vmin.f32 %v744, 1.0
        %s747 = scalar_lea.vmem %s309, 16 [#allocation8]
        %748 = vst.msk [vmem:[%s747] sm:$0xff] %vm712, %v745
        %749 = vst.msk [vmem:[%s747 + $0x8] sm:$0xff] %vm712, %v746
        %v750 = vsel %vm675, %v627, %v660
        %v751 = vsel %vm675, %v628, %v661
        %v752 = vsel %vm675, %v629, %v662
        %v753 = vsel %vm675, %v362, %v582
        %v754 = vsel %vm675, %v355, %v583
        %v755 = vsel %vm675, %v363, %v584
        %v759 = vrot.slane %v753, 2
        %v760 = vrot.slane %v754, 2
        %v761 = vsel %vm366, %v759, %v760
        %v762 = vrot.slane %v755, 2
        %v763 = vsel %vm366, %v760, %v762
        %v769 = vrot.slane %v750, 2
        %v770 = vrot.slane %v751, 2
        %v771 = vsel %vm366, %v769, %v770
        %v772 = vrot.slane %v752, 2
        %v773 = vsel %vm366, %v770, %v772
        %v776 = vsel %vm684, %v761, %v771
        %v777 = vsel %vm685, %v763, %v773
        %v778 = vmax.f32 %v776, 0.0
        %v779 = vmax.f32 %v777, 0.0
        %v780 = vmin.f32 %v778, 1.0
        %v781 = vmin.f32 %v779, 1.0
        %s782 = scalar_lea.vmem %s309, 32 [#allocation8]
        %783 = vst.msk [vmem:[%s782] sm:$0xff] %vm712, %v780
        %784 = vst.msk [vmem:[%s782 + $0x8] sm:$0xff] %vm712, %v781
        %s785 = sand.u32 %s145, 1
        %s786 = scalar_lea.sflag [#allocation4], %s785
        %s787 = sand.u32 %s145, 1
        %s788 = smul.addr %s787, 48
        %s789 = scalar_lea.vmem [#allocation8], %s788
        // Predicated region
        $region45: #{tpu_custom_call.1} parent=31 // pred_check
          %p790 = pneg %p155
        $region46: #{tpu_custom_call.1} parent=31 // pred_check_branch
          %792 = sbr.rel (%p790) target = $region48
        $region47: #{tpu_custom_call.1} parent=31 // pred_region
          %s793 = smul.u32 2, %s28
          %s795 = ssub.s32 768, 768
          %796 = vsyncadd %s786, %s795
          %s797 = smul.addr %s27, 6
          %s798 = sadd.s32 %s793, %s797
          %s799 = smul.addr %s798, 128
          %s800 = scalar_lea.hbm %s3, %s799
          %s801 = sshll.u32 %s789, 4
          %s802 = int_to_ptr.vmem [resolvable:$true] %s801
          %807 = dma.vmem_to_hbm [thread:$0]  %s802, 768, %s800, %s786, 128, 128, 8
        $region48: #{tpu_custom_call.1} parent=31 // pred_fallthru
          _
      $region32: #{tpu_custom_call.1} parent=5 // pred_fallthru
        _
      %p808 = scmp.le.s32.totalorder 2, %s18
      // Predicated region
      $region49: #{tpu_custom_call.1} parent=5 // pred_check
        %p809 = pneg %p808
      $region50: #{tpu_custom_call.1} parent=5 // pred_check_branch
        %811 = sbr.rel (%p809) target = $region52
      $region51: #{tpu_custom_call.1} parent=5 // pred_region
        %s812 = ssub.s32 %s18, 2
        // Predicated region
        $region53: #{tpu_custom_call.1} parent=51 // pred_check
          %p813 = pneg %p161
        $region54: #{tpu_custom_call.1} parent=51 // pred_check_branch
          %815 = sbr.rel (%p813) target = $region56
        $region55: #{tpu_custom_call.1} parent=51 // pred_region
          %s816 = sand.u32 %s146, 1
          %s817 = scalar_lea.sflag [#allocation4], %s816
          %s818 = sand.u32 %s146, 1
          %s819 = smul.addr %s818, 48
          %s820 = scalar_lea.vmem [#allocation8], %s819
          %821 = dma.done %s817, 768
        $region56: #{tpu_custom_call.1} parent=51 // pred_fallthru
          _
      $region52: #{tpu_custom_call.1} parent=5 // pred_fallthru
        _
    $region6: #{tpu_custom_call.1} parent=1 // loop_footer
      %s22 = sadd.s32 1, %s18
    $region7: #{tpu_custom_call.1} parent=1 // loop_footer_branch
      %17 = sbr.rel target = $region3
    $region8: #{tpu_custom_call.1} parent=1 // loop_exit
      _
    %822 = vsyncpa [#allocation3], 1
    %s823 = scalar_lea.sflag [#allocation3], 1
    %824 = vsyncpa %s823, 1
    %825 = vsyncpa [#allocation6], 1
    %s826 = scalar_lea.sflag [#allocation6], 1
    %827 = vsyncpa %s826, 1
    %828 = vsyncpa [#allocation4], 1
    %s829 = scalar_lea.sflag [#allocation4], 1
    %830 = vsyncpa %s829, 1

</llo_original>
